<compile_context>
chip_gen: v5e
topology: v5e:2x2
jax: 0.10.0
libtpu: 0.0.40
codegen_flags: <defaults>
</compile_context>

<pallas_src>
import functools
import math

import jax
import jax.numpy as jnp
from jax.experimental import pallas as pl
from jax.experimental.pallas import tpu as pltpu

SMOOTH = 1.0
_LANES = 128
_NCORES = 2        # leading "parallel" grid axis (v7x: 2 TensorCores / chip)
_TN_MAX = 8192     # cap on the lane tile (bounds the unrolled chunk loop)


def _soft_dice_kernel(x_ref, y_ref, oxy_ref, osum_ref, *, n, tn, steps, ncores):
    """Grid = (ncores, steps). Core p owns column tiles [p*steps, (p+1)*steps).

    x_ref, y_ref : (rows, tn) tiles of the (rows, n) inputs (lanes = reduced axis)
    oxy_ref      : (rows, 128) f32 accumulator -> sum over lanes of x*y
    osum_ref     : (rows, 128) f32 accumulator -> sum over lanes of (x + y)
    """
    p = pl.program_id(0)
    k = pl.program_id(1)

    @pl.when(k == 0)
    def _():
        oxy_ref[...] = jnp.zeros_like(oxy_ref)
        osum_ref[...] = jnp.zeros_like(osum_ref)

    def accumulate(valid_cols):
        # valid_cols: static python int in (0, tn]; only the last (partial)
        # chunk of a partial tile gets an iota/where mask.
        full_chunks = valid_cols // _LANES
        rem = valid_cols % _LANES

        def load_chunk(j, width):
            xj = x_ref[:, j * _LANES:(j + 1) * _LANES].astype(jnp.float32)
            yj = y_ref[:, j * _LANES:(j + 1) * _LANES].astype(jnp.float32)
            if width < _LANES:
                lane = jax.lax.broadcasted_iota(jnp.int32, xj.shape, 1)
                valid = lane < width
                xj = jnp.where(valid, xj, 0.0)
                yj = jnp.where(valid, yj, 0.0)
            return xj, yj

        p_xy = None
        p_s = None
        widths = [_LANES] * full_chunks + ([rem] if rem else [])
        for j, width in enumerate(widths):
            xj, yj = load_chunk(j, width)
            xy = xj * yj
            s = xj + yj
            p_xy = xy if p_xy is None else p_xy + xy
            p_s = s if p_s is None else p_s + s
        oxy_ref[...] += p_xy
        osum_ref[...] += p_s

    total_tiles = -(-n // tn)
    last_cols = n - (total_tiles - 1) * tn   # valid columns in the global last tile

    # Common fast path: every tile of every core is full -> no predicates.
    if total_tiles == ncores * steps and last_cols == tn:
        accumulate(tn)
        return

    for p_val in range(ncores):
        tile_lo = p_val * steps
        tile_hi = min((p_val + 1) * steps, total_tiles)
        n_valid = tile_hi - tile_lo
        if n_valid <= 0:
            continue                       # this core has no valid tiles
        owns_partial = (tile_hi == total_tiles) and (last_cols < tn)
        n_full = n_valid - (1 if owns_partial else 0)

        @pl.when(p == p_val)
        def _(n_full=n_full, n_valid=n_valid, owns_partial=owns_partial):
            if n_full >= steps:
                accumulate(tn)             # every step of this core is full
            else:
                if n_full > 0:
                    @pl.when(k < n_full)
                    def _():
                        accumulate(tn)
                if owns_partial:
                    @pl.when(k == n_valid - 1)
                    def _():
                        accumulate(last_cols)
        # steps with k >= n_valid fall past the array -> contribute nothing
        # (their DMA is clamped to the last valid tile in the index_map).


def _vmem_capacity_bytes():
    try:
        info = pltpu.get_tpu_info()
        cap = getattr(info, "vmem_capacity_bytes", None)
        if cap:
            return int(cap)
    except Exception:
        pass
    return 64 * 1024 * 1024   # conservative fallback: v7x per-TensorCore VMEM


def soft_dice_loss_git(x, y, *, smooth=SMOOTH):
    """x: (b, c, h, w) predictions in (0,1); y: (b, c, h, w) one-hot targets."""
    b, c, h, w = x.shape
    assert y.shape == x.shape
    rows = b * c
    n = h * w
    itemsizes = jnp.dtype(x.dtype).itemsize + jnp.dtype(y.dtype).itemsize

    vmem_cap = _vmem_capacity_bytes()
    # Double-buffered *input* byte budget, generation aware:
    #   v5e/v6e (128 MiB physical) -> 56 MiB; v7x (64 MiB per TC) -> ~28 MiB.
    input_budget = min(int(vmem_cap * 0.45), 56 * 1024 * 1024)

    # Fold spatial into the row axis (copy-free reshape): (a) align rows to the
    # 8-row sublane tile, (b) grow rows while the lane tile is capped so each
    # grid step still fills the budget (amortizes ~0.35us/step overhead).
    s_fold = 1
    need = 8 // math.gcd(rows, 8)
    if need > 1 and n % need == 0:
        s_fold = need
    while (n % (2 * s_fold) == 0 and n // (2 * s_fold) >= 512
           and 2 * (rows * 2 * s_fold) * _TN_MAX * itemsizes <= input_budget):
        s_fold *= 2
    rows_eff = rows * s_fold
    n_eff = n // s_fold

    # Lane tile: multiple of 128, within budget, <= _TN_MAX; aim for at least
    # _NCORES tiles so both TensorCores get work on v7x.
    tn_cap = input_budget // (2 * rows_eff * itemsizes)
    tn_cap = max(_LANES, (tn_cap // _LANES) * _LANES)
    tn_cap = min(tn_cap, _TN_MAX)
    tn_target = -(-n_eff // _NCORES)
    tn = min(tn_cap, ((tn_target + _LANES - 1) // _LANES) * _LANES)

    total_tiles = -(-n_eff // tn)
    steps = -(-total_tiles // _NCORES)
    grid = (_NCORES, steps)

    # Copy-free contiguous reshape NCHW -> (rows_eff, n_eff); native dtypes kept
    # (the kernel upcasts to f32 for accumulation).
    x2 = x.reshape(rows_eff, n_eff)
    y2 = y.reshape(rows_eff, n_eff)

    resident_in = 2 * rows_eff * tn * itemsizes            # double-buffered inputs
    vmem_limit = int(min(vmem_cap, max(resident_in + (4 << 20), 32 << 20)))

    def in_map(p, k):
        # Clamp so a core whose trailing tiles fall past the array re-reads the
        # last valid tile instead of DMA-ing out of bounds (those steps add 0).
        return (0, jnp.minimum(p * steps + k, total_tiles - 1))

    kernel = functools.partial(_soft_dice_kernel, n=n_eff, tn=tn, steps=steps,
                               ncores=_NCORES)

    out_xy, out_sum = pl.pallas_call(
        kernel,
        out_shape=(
            jax.ShapeDtypeStruct((_NCORES, rows_eff, _LANES), jnp.float32),
            jax.ShapeDtypeStruct((_NCORES, rows_eff, _LANES), jnp.float32),
        ),
        grid_spec=pltpu.PrefetchScalarGridSpec(
            num_scalar_prefetch=0,
            grid=grid,
            in_specs=[
                pl.BlockSpec((rows_eff, tn), in_map),
                pl.BlockSpec((rows_eff, tn), in_map),
            ],
            out_specs=(
                pl.BlockSpec((None, rows_eff, _LANES), lambda p, k: (p, 0, 0)),
                pl.BlockSpec((None, rows_eff, _LANES), lambda p, k: (p, 0, 0)),
            ),
        ),
        compiler_params=pltpu.CompilerParams(
            dimension_semantics=("parallel", "arbitrary"),
            vmem_limit_bytes=vmem_limit,
        ),
    )(x2, y2)

    # Epilogue (tiny, left to XLA): fold cores / lanes / folded rows, then
    # batch_dice=True fold over batch -> per-channel tp and sum(x)+sum(y).
    tp = out_xy.sum(axis=(0, 2)).reshape(b, c, s_fold).sum(axis=(0, 2))
    sxy = out_sum.sum(axis=(0, 2)).reshape(b, c, s_fold).sum(axis=(0, 2))
    # 2*tp + fp + fn == sum(x) + sum(y)
    dc = (2.0 * tp + smooth) / (sxy + smooth)
    # do_bg=True keeps all channels; dc_log=True -> mean(-log(dc))
    return jnp.mean(-jnp.log(dc))


def _reference_loss(x, y, smooth=SMOOTH):
    # pure-JAX reference matching the PyTorch forward (default flags)
    axes = (0, 2, 3)  # batch_dice=True -> [0] + spatial axes
    xf = x.astype(jnp.float32)
    yf = y.astype(jnp.float32)
    tp = jnp.sum(xf * yf, axis=axes)
    fp = jnp.sum(xf * (1.0 - yf), axis=axes)
    fn = jnp.sum((1.0 - xf) * yf, axis=axes)
    dc = (2.0 * tp + smooth) / (2.0 * tp + fp + fn + smooth)
    return jnp.mean(-jnp.log(dc))


if __name__ == "__main__":
    b, c, h, w = 2, 4, 16, 16
    key = jax.random.PRNGKey(0)
    kx, ky = jax.random.split(key)

    # predictions in (0, 1) (as would come out of a nonlinearity)
    x = jax.random.uniform(kx, (b, c, h, w), dtype=jnp.float32)
    # ground truth: label map -> one-hot with same shape as x (b, c, h, w)
    labels = jax.random.randint(ky, (b, h, w), 0, c)
    y = jnp.transpose(jax.nn.one_hot(labels, c, dtype=jnp.float32), (0, 3, 1, 2))

    loss = soft_dice_loss_git(x, y)
    loss = jax.block_until_ready(loss)

    ref = _reference_loss(x, y)
    assert jnp.allclose(loss, ref, rtol=1e-5, atol=1e-5), (loss, ref)

    print("KERNEL_OK")
</pallas_src>

<mosaic_0001>
module attributes {stable_mosaic.version = 11 : i64} {
  func.func @_soft_dice_kernel(%arg0: i32, %arg1: i32, %arg2: memref<8x128xf32, #tpu.memory_space<vmem>>, %arg3: memref<8x128xf32, #tpu.memory_space<vmem>>, %arg4: memref<1x8x128xf32, #tpu.memory_space<vmem>>, %arg5: memref<1x8x128xf32, #tpu.memory_space<vmem>>) attributes {dimension_semantics = [#tpu.dimension_semantics<parallel>, #tpu.dimension_semantics<arbitrary>], iteration_bounds = array<i64: 2, 1>, scalar_prefetch = 0 : i64, scratch_operands = 0 : i64, tpu.core_type = #tpu.core_type<tc>, window_params = [{transform_indices = @transform_0, window_bounds = array<i64: 8, 128>}, {transform_indices = @transform_1, window_bounds = array<i64: 8, 128>}, {transform_indices = @transform_2, window_bounds = array<i64: 1, 8, 128>}, {transform_indices = @transform_3, window_bounds = array<i64: 1, 8, 128>}]} {
    %c0_i32 = arith.constant 0 : i32
    %0 = arith.cmpi eq, %arg1, %c0_i32 : i32
    %1 = arith.extui %0 : i1 to i32
    %c0_i32_0 = arith.constant 0 : i32
    %2 = arith.cmpi ne, %1, %c0_i32_0 : i32
    scf.if %2 {
      %cst = arith.constant 0.000000e+00 : f32
      %19 = vector.broadcast %cst : f32 to vector<8x128xf32>
      %c0_16 = arith.constant 0 : index
      %c0_17 = arith.constant 0 : index
      %c0_18 = arith.constant 0 : index
      %20 = vector.load %arg4[%c0_16, %c0_17, %c0_18] : memref<1x8x128xf32, #tpu.memory_space<vmem>>, vector<1x8x128xf32>
      %21 = vector.shape_cast %20 : vector<1x8x128xf32> to vector<8x128xf32>
      %22 = vector.shape_cast %19 : vector<8x128xf32> to vector<1x8x128xf32>
      tpu.vector_store %arg4[%c0_16, %c0_17, %c0_18], %22 {strides = array<i32>} : memref<1x8x128xf32, #tpu.memory_space<vmem>>, vector<1x8x128xf32>,
      %cst_19 = arith.constant 0.000000e+00 : f32
      %23 = vector.broadcast %cst_19 : f32 to vector<8x128xf32>
      %c0_20 = arith.constant 0 : index
      %c0_21 = arith.constant 0 : index
      %c0_22 = arith.constant 0 : index
      %24 = vector.load %arg5[%c0_20, %c0_21, %c0_22] : memref<1x8x128xf32, #tpu.memory_space<vmem>>, vector<1x8x128xf32>
      %25 = vector.shape_cast %24 : vector<1x8x128xf32> to vector<8x128xf32>
      %26 = vector.shape_cast %23 : vector<8x128xf32> to vector<1x8x128xf32>
      tpu.vector_store %arg5[%c0_20, %c0_21, %c0_22], %26 {strides = array<i32>} : memref<1x8x128xf32, #tpu.memory_space<vmem>>, vector<1x8x128xf32>,
    } else {
    }
    %c0 = arith.constant 0 : index
    %c0_1 = arith.constant 0 : index
    %3 = vector.load %arg2[%c0, %c0_1] : memref<8x128xf32, #tpu.memory_space<vmem>>, vector<8x128xf32>
    %c0_2 = arith.constant 0 : index
    %c0_3 = arith.constant 0 : index
    %4 = vector.load %arg3[%c0_2, %c0_3] : memref<8x128xf32, #tpu.memory_space<vmem>>, vector<8x128xf32>
    %5 = arith.mulf %3, %4 : vector<8x128xf32>
    %6 = arith.addf %3, %4 : vector<8x128xf32>
    %c0_4 = arith.constant 0 : index
    %c0_5 = arith.constant 0 : index
    %c0_6 = arith.constant 0 : index
    %7 = vector.load %arg4[%c0_4, %c0_5, %c0_6] : memref<1x8x128xf32, #tpu.memory_space<vmem>>, vector<1x8x128xf32>
    %8 = vector.shape_cast %7 : vector<1x8x128xf32> to vector<8x128xf32>
    %9 = arith.addf %8, %5 : vector<8x128xf32>
    %c0_7 = arith.constant 0 : index
    %c0_8 = arith.constant 0 : index
    %c0_9 = arith.constant 0 : index
    %10 = vector.load %arg4[%c0_7, %c0_8, %c0_9] : memref<1x8x128xf32, #tpu.memory_space<vmem>>, vector<1x8x128xf32>
    %11 = vector.shape_cast %10 : vector<1x8x128xf32> to vector<8x128xf32>
    %12 = vector.shape_cast %9 : vector<8x128xf32> to vector<1x8x128xf32>
    tpu.vector_store %arg4[%c0_7, %c0_8, %c0_9], %12 {strides = array<i32>} : memref<1x8x128xf32, #tpu.memory_space<vmem>>, vector<1x8x128xf32>,
    %c0_10 = arith.constant 0 : index
    %c0_11 = arith.constant 0 : index
    %c0_12 = arith.constant 0 : index
    %13 = vector.load %arg5[%c0_10, %c0_11, %c0_12] : memref<1x8x128xf32, #tpu.memory_space<vmem>>, vector<1x8x128xf32>
    %14 = vector.shape_cast %13 : vector<1x8x128xf32> to vector<8x128xf32>
    %15 = arith.addf %14, %6 : vector<8x128xf32>
    %c0_13 = arith.constant 0 : index
    %c0_14 = arith.constant 0 : index
    %c0_15 = arith.constant 0 : index
    %16 = vector.load %arg5[%c0_13, %c0_14, %c0_15] : memref<1x8x128xf32, #tpu.memory_space<vmem>>, vector<1x8x128xf32>
    %17 = vector.shape_cast %16 : vector<1x8x128xf32> to vector<8x128xf32>
    %18 = vector.shape_cast %15 : vector<8x128xf32> to vector<1x8x128xf32>
    tpu.vector_store %arg5[%c0_13, %c0_14, %c0_15], %18 {strides = array<i32>} : memref<1x8x128xf32, #tpu.memory_space<vmem>>, vector<1x8x128xf32>,
    return
  }
  func.func @transform_0(%arg0: i32, %arg1: i32) -> (i32, i32) {
    %c1_i32 = arith.constant 1 : i32
    %0 = arith.muli %arg0, %c1_i32 : i32
    %1 = arith.addi %0, %arg1 : i32
    %c1_i32_0 = arith.constant 1 : i32
    %2 = arith.minsi %1, %c1_i32_0 : i32
    %c0_i32 = arith.constant 0 : i32
    %c0_i32_1 = arith.constant 0 : i32
    return %c0_i32, %2 : i32, i32
  }
  func.func @transform_1(%arg0: i32, %arg1: i32) -> (i32, i32) {
    %c1_i32 = arith.constant 1 : i32
    %0 = arith.muli %arg0, %c1_i32 : i32
    %1 = arith.addi %0, %arg1 : i32
    %c1_i32_0 = arith.constant 1 : i32
    %2 = arith.minsi %1, %c1_i32_0 : i32
    %c0_i32 = arith.constant 0 : i32
    %c0_i32_1 = arith.constant 0 : i32
    return %c0_i32, %2 : i32, i32
  }
  func.func @transform_2(%arg0: i32, %arg1: i32) -> (i32, i32, i32) {
    %c0_i32 = arith.constant 0 : i32
    %c0_i32_0 = arith.constant 0 : i32
    %c0_i32_1 = arith.constant 0 : i32
    return %arg0, %c0_i32, %c0_i32_0 : i32, i32, i32
  }
  func.func @transform_3(%arg0: i32, %arg1: i32) -> (i32, i32, i32) {
    %c0_i32 = arith.constant 0 : i32
    %c0_i32_0 = arith.constant 0 : i32
    %c0_i32_1 = arith.constant 0 : i32
    return %arg0, %c0_i32, %c0_i32_0 : i32, i32, i32
  }
}

</mosaic_0001>

<llo_original>
// kernel: tpu_custom_call.1
$region0: #{tpu_custom_call.1}
  #allocation0 [shape = 'u32[]', space=smem, size = 0x4, offset = 0x4, fixed_abs, tag = 'smem constant byte address 0x4 - core index']
  #allocation1 [shape = 'u32[72,128]{1,0:T(1,128)}', space=vmem, size = 0x9000, scoped, tag = 'internal scratch']
  %s0 = inlined_call_operand.hbm [shape: f32[8,256], index: 0, kind: input, shape index: {}]
  %s1 = inlined_call_operand.hbm [shape: f32[8,256], index: 1, kind: input, shape index: {}]
  %s2 = inlined_call_operand.hbm [shape: f32[2,8,128], index: 2, kind: output, shape index: {0}]
  %s3 = inlined_call_operand.hbm [shape: f32[2,8,128], index: 3, kind: output, shape index: {1}]
  %4 = xla_tuple %s2, %s3
  %s5 = sld [smem:[#allocation0]]
  $region61: #{tpu_custom_call.1} parent=0
    _
  %s7 = ssub.s32 1, %s5
  %s8 = scalar_select 0, %s7, %s5
  $region1: #{tpu_custom_call.1} parent=0
    #allocation2 [shape = 'u8[8192]{0}', space=vmem, size = 0x2000, scoped, tag = 'input window, operand 0']
    #allocation3 [shape = 's32[2]{0}', space=sflag, size = 0x8, scoped, tag = 'scoped memory for tpu_custom_call.1']
    #allocation4 [shape = 's32[2]{0}', space=sflag, size = 0x8, scoped, tag = 'scoped memory for tpu_custom_call.1']
    #allocation5 [shape = 'u8[8192]{0}', space=vmem, size = 0x2000, scoped, tag = 'input window, operand 1']
    #allocation6 [shape = 's32[2]{0}', space=sflag, size = 0x8, scoped, tag = 'scoped memory for tpu_custom_call.1']
    #allocation7 [shape = 'u8[8192]{0}', space=vmem, size = 0x2000, scoped, tag = 'output window, operand 0']
    #allocation8 [shape = 'u8[8192]{0}', space=vmem, size = 0x2000, scoped, tag = 'output window, operand 1']
    #allocation9 [shape = 's32[2]{0}', space=sflag, size = 0x8, scoped, tag = 'scoped memory for tpu_custom_call.1']
    %9 = vsyncpa [#allocation3], 0
    %s10 = scalar_lea.sflag [#allocation3], 1
    %11 = vsyncpa %s10, 0
    %12 = vsyncpa [#allocation6], 0
    %s13 = scalar_lea.sflag [#allocation6], 1
    %14 = vsyncpa %s13, 0
    %15 = vsyncpa [#allocation4], 0
    %s16 = scalar_lea.sflag [#allocation4], 1
    %17 = vsyncpa %s16, 0
    %18 = vsyncpa [#allocation9], 0
    %s19 = scalar_lea.sflag [#allocation9], 1
    %20 = vsyncpa %s19, 0
    loop: start=0, step=1, limit=4
    $region2: #{tpu_custom_call.1} parent=1 // loop_pre_header
      _
    $region3: #{tpu_custom_call.1} parent=1 // loop_header
      %s22 = sphi 0, %s26
      %p23 = scmp.ge.s32.totalorder %s22, 4
      %s29 = sphi 0, %s41
      %s30 = sphi 0, %s37
      %s31 = sphi 0, %s29
      %s32 = sphi 0, %s30
      %s33 = sphi 0, %s31
      %s34 = sphi 0, %s32
      %s50 = sphi 0, %s52
      %s53 = sphi 0, %s50
      %s54 = sphi 0, %s53
      %s70 = sphi 0, %s54
      %s82 = sphi 0, %s84
      %s85 = sphi 0, %s82
      %s86 = sphi 0, %s85
      %s102 = sphi 0, %s86
      %s108 = sphi 0, %s110
      %s111 = sphi 0, %s108
      %s112 = sphi 0, %s111
      %s128 = sphi 0, %s112
      %s134 = sphi 0, %s136
      %s137 = sphi 0, %s134
      %s138 = sphi 0, %s137
      %s154 = sphi 0, %s138
    $region4: #{tpu_custom_call.1} parent=1 // loop_header_branch
      %25 = sbr.rel (%p23) target = $region8
    $region5: #{tpu_custom_call.1} parent=1 // loop_body
      %s27 = ssub.s32 %s22, 1
      %s28 = ssub.s32 %s22, 2
      %s35 = sadd.s32 1, %s30
      %p36 = scmp.ge.s32.totalorder %s35, 1
      %s37 = scalar_select %p36, 0, %s35
      %s38 = sadd.s32 1, %s29
      %s39 = scalar_select %p36, %s38, %s29
      %p40 = scmp.ge.s32.totalorder %s39, 2
      %s41 = scalar_select %p40, 0, %s39
      %s42 = sadd.s32 %s29, %s30
      %p43 = scmp.lt.s32.totalorder %s42, 1
      %s44 = scalar_select %p43, %s42, 1
      %s45 = sadd.s32 %s41, %s37
      %p46 = scmp.lt.s32.totalorder %s45, 1
      %s47 = scalar_select %p46, %s45, 1
      %s48 = ssub.s32 %s44, %s47
      %p49 = scmp.eq.s32.totalorder %s48, 0
      %s51 = sadd.s32 %s50, 1
      %s52 = scalar_select %p49, %s50, %s51
      %p55 = pneg %p49
      %p56 = scmp.eq.s32.totalorder %s22, 1
      %p57 = por %p55, %p56
      %p58 = scmp.ne.s32.totalorder %s50, %s53
      %p59 = scmp.eq.s32.totalorder %s22, 0
      %p60 = por %p58, %p59
      %p61 = scmp.ne.s32.totalorder %s50, %s53
      %p62 = scmp.eq.s32.totalorder %s27, 1
      %p63 = por %p61, %p62
      %p64 = scmp.ne.s32.totalorder %s53, %s54
      %p65 = scmp.eq.s32.totalorder %s27, 0
      %p66 = por %p64, %p65
      %p67 = scmp.ne.s32.totalorder %s53, %s54
      %p68 = scmp.eq.s32.totalorder %s28, 1
      %p69 = por %p67, %p68
      %p71 = scmp.ne.s32.totalorder %s54, %s70
      %p72 = scmp.eq.s32.totalorder %s28, 0
      %p73 = por %p71, %p72
      %s74 = sadd.s32 %s29, %s30
      %p75 = scmp.lt.s32.totalorder %s74, 1
      %s76 = scalar_select %p75, %s74, 1
      %s77 = sadd.s32 %s41, %s37
      %p78 = scmp.lt.s32.totalorder %s77, 1
      %s79 = scalar_select %p78, %s77, 1
      %s80 = ssub.s32 %s76, %s79
      %p81 = scmp.eq.s32.totalorder %s80, 0
      %s83 = sadd.s32 %s82, 1
      %s84 = scalar_select %p81, %s82, %s83
      %p87 = pneg %p81
      %p88 = scmp.eq.s32.totalorder %s22, 1
      %p89 = por %p87, %p88
      %p90 = scmp.ne.s32.totalorder %s82, %s85
      %p91 = scmp.eq.s32.totalorder %s22, 0
      %p92 = por %p90, %p91
      %p93 = scmp.ne.s32.totalorder %s82, %s85
      %p94 = scmp.eq.s32.totalorder %s27, 1
      %p95 = por %p93, %p94
      %p96 = scmp.ne.s32.totalorder %s85, %s86
      %p97 = scmp.eq.s32.totalorder %s27, 0
      %p98 = por %p96, %p97
      %p99 = scmp.ne.s32.totalorder %s85, %s86
      %p100 = scmp.eq.s32.totalorder %s28, 1
      %p101 = por %p99, %p100
      %p103 = scmp.ne.s32.totalorder %s86, %s102
      %p104 = scmp.eq.s32.totalorder %s28, 0
      %p105 = por %p103, %p104
      %s106 = ssub.s32 %s29, %s41
      %p107 = scmp.eq.s32.totalorder %s106, 0
      %s109 = sadd.s32 %s108, 1
      %s110 = scalar_select %p107, %s108, %s109
      %p113 = pneg %p107
      %p114 = scmp.eq.s32.totalorder %s22, 1
      %p115 = por %p113, %p114
      %p116 = scmp.ne.s32.totalorder %s108, %s111
      %p117 = scmp.eq.s32.totalorder %s22, 0
      %p118 = por %p116, %p117
      %p119 = scmp.ne.s32.totalorder %s108, %s111
      %p120 = scmp.eq.s32.totalorder %s27, 1
      %p121 = por %p119, %p120
      %p122 = scmp.ne.s32.totalorder %s111, %s112
      %p123 = scmp.eq.s32.totalorder %s27, 0
      %p124 = por %p122, %p123
      %p125 = scmp.ne.s32.totalorder %s111, %s112
      %p126 = scmp.eq.s32.totalorder %s28, 1
      %p127 = por %p125, %p126
      %p129 = scmp.ne.s32.totalorder %s112, %s128
      %p130 = scmp.eq.s32.totalorder %s28, 0
      %p131 = por %p129, %p130
      %s132 = ssub.s32 %s29, %s41
      %p133 = scmp.eq.s32.totalorder %s132, 0
      %s135 = sadd.s32 %s134, 1
      %s136 = scalar_select %p133, %s134, %s135
      %p139 = pneg %p133
      %p140 = scmp.eq.s32.totalorder %s22, 1
      %p141 = por %p139, %p140
      %p142 = scmp.ne.s32.totalorder %s134, %s137
      %p143 = scmp.eq.s32.totalorder %s22, 0
      %p144 = por %p142, %p143
      %p145 = scmp.ne.s32.totalorder %s134, %s137
      %p146 = scmp.eq.s32.totalorder %s27, 1
      %p147 = por %p145, %p146
      %p148 = scmp.ne.s32.totalorder %s137, %s138
      %p149 = scmp.eq.s32.totalorder %s27, 0
      %p150 = por %p148, %p149
      %p151 = scmp.ne.s32.totalorder %s137, %s138
      %p152 = scmp.eq.s32.totalorder %s28, 1
      %p153 = por %p151, %p152
      %p155 = scmp.ne.s32.totalorder %s138, %s154
      %p156 = scmp.eq.s32.totalorder %s28, 0
      %p157 = por %p155, %p156
      %p158 = scmp.le.s32.totalorder 1, %s22
      %p159 = scmp.lt.s32.totalorder %s22, 3
      %p160 = pnand %p158, %p159
      %p161 = pneg %p160
      // Predicated region
      $region9: #{tpu_custom_call.1} parent=5 // pred_check
        _
      $region10: #{tpu_custom_call.1} parent=5 // pred_check_branch
        %163 = sbr.rel (%p160) target = $region12
      $region11: #{tpu_custom_call.1} parent=5 // pred_region
        %s164 = ssub.s32 %s22, 1
      $region12: #{tpu_custom_call.1} parent=5 // pred_fallthru
        _
      %p165 = scmp.lt.s32.totalorder %s22, 2
      // Predicated region
      $region13: #{tpu_custom_call.1} parent=5 // pred_check
        %p166 = pneg %p165
      $region14: #{tpu_custom_call.1} parent=5 // pred_check_branch
        %168 = sbr.rel (%p166) target = $region16
      $region15: #{tpu_custom_call.1} parent=5 // pred_region
        // Predicated region
        $region17: #{tpu_custom_call.1} parent=15 // pred_check
          %p169 = pneg %p60
        $region18: #{tpu_custom_call.1} parent=15 // pred_check_branch
          %171 = sbr.rel (%p169) target = $region20
        $region19: #{tpu_custom_call.1} parent=15 // pred_region
          %s172 = sand.u32 %s50, 1
          %s173 = scalar_lea.sflag [#allocation3], %s172
          %s174 = sand.u32 %s50, 1
          %s175 = smul.addr %s174, 8
          %s176 = scalar_lea.vmem [#allocation2], %s175
          %s177 = sadd.s32 %s29, %s30
          %p178 = scmp.lt.s32.totalorder %s177, 1
          %s179 = scalar_select %p178, %s177, 1
          %181 = vsyncadd %s173, 0
          %s182 = smul.addr %s179, 8
          %s183 = scalar_lea.hbm %s0, %s182
          %s185 = sshll.u32 %s183, 4
          %s186 = int_to_ptr.hbm [resolvable:$true] %s185
          %s187 = sshll.u32 %s176, 4
          %s188 = int_to_ptr.vmem [resolvable:$true] %s187
          %190 = dma.hbm_to_vmem [thread:$0]  %s186, 128, %s188, %s173
        $region20: #{tpu_custom_call.1} parent=15 // pred_fallthru
          _
        // Predicated region
        $region21: #{tpu_custom_call.1} parent=15 // pred_check
          %p191 = pneg %p92
        $region22: #{tpu_custom_call.1} parent=15 // pred_check_branch
          %193 = sbr.rel (%p191) target = $region24
        $region23: #{tpu_custom_call.1} parent=15 // pred_region
          %s194 = sand.u32 %s82, 1
          %s195 = scalar_lea.sflag [#allocation6], %s194
          %s196 = sand.u32 %s82, 1
          %s197 = smul.addr %s196, 8
          %s198 = scalar_lea.vmem [#allocation5], %s197
          %s199 = sadd.s32 %s29, %s30
          %p200 = scmp.lt.s32.totalorder %s199, 1
          %s201 = scalar_select %p200, %s199, 1
          %203 = vsyncadd %s195, 0
          %s204 = smul.addr %s201, 8
          %s205 = scalar_lea.hbm %s1, %s204
          %s207 = sshll.u32 %s205, 4
          %s208 = int_to_ptr.hbm [resolvable:$true] %s207
          %s209 = sshll.u32 %s198, 4
          %s210 = int_to_ptr.vmem [resolvable:$true] %s209
          %212 = dma.hbm_to_vmem [thread:$0]  %s208, 128, %s210, %s195
        $region24: #{tpu_custom_call.1} parent=15 // pred_fallthru
          _
      $region16: #{tpu_custom_call.1} parent=5 // pred_fallthru
        _
      %p213 = scmp.le.s32.totalorder 1, %s22
      %p214 = scmp.lt.s32.totalorder %s22, 3
      %p215 = pnand %p213, %p214
      %p216 = pneg %p215
      // Predicated region
      $region25: #{tpu_custom_call.1} parent=5 // pred_check
        _
      $region26: #{tpu_custom_call.1} parent=5 // pred_check_branch
        %218 = sbr.rel (%p215) target = $region28
      $region27: #{tpu_custom_call.1} parent=5 // pred_region
        %s219 = ssub.s32 %s22, 1
        %s220 = sand.u32 %s53, 1
        %s221 = scalar_lea.sflag [#allocation3], %s220
        %s222 = sand.u32 %s53, 1
        %s223 = smul.addr %s222, 8
        %s224 = scalar_lea.vmem [#allocation2], %s223
        // Predicated region
        $region29: #{tpu_custom_call.1} parent=27 // pred_check
          %p225 = pneg %p66
        $region30: #{tpu_custom_call.1} parent=27 // pred_check_branch
          %227 = sbr.rel (%p225) target = $region32
        $region31: #{tpu_custom_call.1} parent=27 // pred_region
          %229 = dma.done %s221, 128
        $region32: #{tpu_custom_call.1} parent=27 // pred_fallthru
          _
        %s230 = sand.u32 %s85, 1
        %s231 = scalar_lea.sflag [#allocation6], %s230
        %s232 = sand.u32 %s85, 1
        %s233 = smul.addr %s232, 8
        %s234 = scalar_lea.vmem [#allocation5], %s233
        // Predicated region
        $region33: #{tpu_custom_call.1} parent=27 // pred_check
          %p235 = pneg %p98
        $region34: #{tpu_custom_call.1} parent=27 // pred_check_branch
          %237 = sbr.rel (%p235) target = $region36
        $region35: #{tpu_custom_call.1} parent=27 // pred_region
          %239 = dma.done %s231, 128
        $region36: #{tpu_custom_call.1} parent=27 // pred_fallthru
          _
        %s240 = sand.u32 %s53, 1
        %s241 = scalar_lea.sflag [#allocation3], %s240
        %s242 = sand.u32 %s53, 1
        %s243 = smul.addr %s242, 8
        %s244 = scalar_lea.vmem [#allocation2], %s243
        %p245 = pneg %p66
        %p246 = pneg %p63
        %s247 = sand.u32 %s85, 1
        %s248 = scalar_lea.sflag [#allocation6], %s247
        %s249 = sand.u32 %s85, 1
        %s250 = smul.addr %s249, 8
        %s251 = scalar_lea.vmem [#allocation5], %s250
        %p252 = pneg %p98
        %p253 = pneg %p95
        %p254 = pneg %p124
        %p255 = pneg %p121
        %s256 = sand.u32 %s111, 1
        %s257 = scalar_lea.sflag [#allocation4], %s256
        %s258 = sand.u32 %s111, 1
        %s259 = smul.addr %s258, 8
        %s260 = scalar_lea.vmem [#allocation7], %s259
        %p261 = pneg %p150
        %p262 = pneg %p147
        %s263 = sand.u32 %s137, 1
        %s264 = scalar_lea.sflag [#allocation9], %s263
        %s265 = sand.u32 %s137, 1
        %s266 = smul.addr %s265, 8
        %s267 = scalar_lea.vmem [#allocation8], %s266
        %s268 = sadd.s32 %s31, %s32
        %p269 = scmp.lt.s32.totalorder %s268, 1
        %s270 = scalar_select %p269, %s268, 1
        %s271 = sadd.s32 %s31, %s32
        %p272 = scmp.lt.s32.totalorder %s271, 1
        %s273 = scalar_select %p272, %s271, 1
        %p274 = scmp.eq.s32.totalorder %s32, 0
        // Predicated region
        $region37: #{tpu_custom_call.1} parent=27 // pred_check
          %p275 = pneg %p274
        $region38: #{tpu_custom_call.1} parent=27 // pred_check_branch
          %277 = sbr.rel (%p275) target = $region40
        $region39: #{tpu_custom_call.1} parent=27 // pred_region
          %278 = vst [vmem:[%s260] sm:$0xff] 0.0
          %279 = vst [vmem:[%s267] sm:$0xff] 0.0
        $region40: #{tpu_custom_call.1} parent=27 // pred_fallthru
          _
        %v280 = vld [vmem:[%s224] sm:$0xff]
        %v281 = vld [vmem:[%s234] sm:$0xff]
        %v282 = vmul.f32 %v280, %v281
        %v283 = vadd.f32 %v280, %v281
        %v284 = vld [vmem:[%s260] sm:$0xff]
        %v285 = vadd.f32 %v284, %v282
        %286 = vst [vmem:[%s260] sm:$0xff] %v285
        %v287 = vld [vmem:[%s267] sm:$0xff]
        %v288 = vadd.f32 %v287, %v283
        %289 = vst [vmem:[%s267] sm:$0xff] %v288
        %s290 = sand.u32 %s111, 1
        %s291 = scalar_lea.sflag [#allocation4], %s290
        %s292 = sand.u32 %s111, 1
        %s293 = smul.addr %s292, 8
        %s294 = scalar_lea.vmem [#allocation7], %s293
        %s295 = sand.u32 %s137, 1
        %s296 = scalar_lea.sflag [#allocation9], %s295
        %s297 = sand.u32 %s137, 1
        %s298 = smul.addr %s297, 8
        %s299 = scalar_lea.vmem [#allocation8], %s298
        // Predicated region
        $region41: #{tpu_custom_call.1} parent=27 // pred_check
          %p300 = pneg %p121
        $region42: #{tpu_custom_call.1} parent=27 // pred_check_branch
          %302 = sbr.rel (%p300) target = $region44
        $region43: #{tpu_custom_call.1} parent=27 // pred_region
          %304 = vsyncadd %s291, 0
          %s305 = smul.addr %s31, 8
          %s306 = scalar_lea.hbm %s2, %s305
          %s308 = sshll.u32 %s294, 4
          %s309 = int_to_ptr.vmem [resolvable:$true] %s308
          %s310 = sshll.u32 %s306, 4
          %s311 = int_to_ptr.hbm [resolvable:$true] %s310
          %313 = dma.vmem_to_hbm [thread:$0]  %s309, 128, %s311, %s291
        $region44: #{tpu_custom_call.1} parent=27 // pred_fallthru
          _
        // Predicated region
        $region45: #{tpu_custom_call.1} parent=27 // pred_check
          %p314 = pneg %p147
        $region46: #{tpu_custom_call.1} parent=27 // pred_check_branch
          %316 = sbr.rel (%p314) target = $region48
        $region47: #{tpu_custom_call.1} parent=27 // pred_region
          %318 = vsyncadd %s296, 0
          %s319 = smul.addr %s31, 8
          %s320 = scalar_lea.hbm %s3, %s319
          %s322 = sshll.u32 %s299, 4
          %s323 = int_to_ptr.vmem [resolvable:$true] %s322
          %s324 = sshll.u32 %s320, 4
          %s325 = int_to_ptr.hbm [resolvable:$true] %s324
          %327 = dma.vmem_to_hbm [thread:$0]  %s323, 128, %s325, %s296
        $region48: #{tpu_custom_call.1} parent=27 // pred_fallthru
          _
      $region28: #{tpu_custom_call.1} parent=5 // pred_fallthru
        _
      %p328 = scmp.le.s32.totalorder 2, %s22
      // Predicated region
      $region49: #{tpu_custom_call.1} parent=5 // pred_check
        %p329 = pneg %p328
      $region50: #{tpu_custom_call.1} parent=5 // pred_check_branch
        %331 = sbr.rel (%p329) target = $region52
      $region51: #{tpu_custom_call.1} parent=5 // pred_region
        %s332 = ssub.s32 %s22, 2
        // Predicated region
        $region53: #{tpu_custom_call.1} parent=51 // pred_check
          %p333 = pneg %p127
        $region54: #{tpu_custom_call.1} parent=51 // pred_check_branch
          %335 = sbr.rel (%p333) target = $region56
        $region55: #{tpu_custom_call.1} parent=51 // pred_region
          %s336 = sand.u32 %s112, 1
          %s337 = scalar_lea.sflag [#allocation4], %s336
          %s338 = sand.u32 %s112, 1
          %s339 = smul.addr %s338, 8
          %s340 = scalar_lea.vmem [#allocation7], %s339
          %342 = dma.done %s337, 128
        $region56: #{tpu_custom_call.1} parent=51 // pred_fallthru
          _
        // Predicated region
        $region57: #{tpu_custom_call.1} parent=51 // pred_check
          %p343 = pneg %p153
        $region58: #{tpu_custom_call.1} parent=51 // pred_check_branch
          %345 = sbr.rel (%p343) target = $region60
        $region59: #{tpu_custom_call.1} parent=51 // pred_region
          %s346 = sand.u32 %s138, 1
          %s347 = scalar_lea.sflag [#allocation9], %s346
          %s348 = sand.u32 %s138, 1
          %s349 = smul.addr %s348, 8
          %s350 = scalar_lea.vmem [#allocation8], %s349
          %352 = dma.done %s347, 128
        $region60: #{tpu_custom_call.1} parent=51 // pred_fallthru
          _
      $region52: #{tpu_custom_call.1} parent=5 // pred_fallthru
        _
    $region6: #{tpu_custom_call.1} parent=1 // loop_footer
      %s26 = sadd.s32 1, %s22
    $region7: #{tpu_custom_call.1} parent=1 // loop_footer_branch
      %21 = sbr.rel target = $region3
    $region8: #{tpu_custom_call.1} parent=1 // loop_exit
      _
    %353 = vsyncpa [#allocation3], 1
    %s354 = scalar_lea.sflag [#allocation3], 1
    %355 = vsyncpa %s354, 1
    %356 = vsyncpa [#allocation6], 1
    %s357 = scalar_lea.sflag [#allocation6], 1
    %358 = vsyncpa %s357, 1
    %359 = vsyncpa [#allocation4], 1
    %s360 = scalar_lea.sflag [#allocation4], 1
    %361 = vsyncpa %s360, 1
    %362 = vsyncpa [#allocation9], 1
    %s363 = scalar_lea.sflag [#allocation9], 1
    %364 = vsyncpa %s363, 1

</llo_original>
